<compile_context>
chip_gen: v7x
topology: tpu7x:2x2x1
jax: 0.10.0
libtpu: 0.0.40
codegen_flags: <defaults>
</compile_context>

<pallas_src>
import functools

import jax
import jax.numpy as jnp
from jax.experimental import pallas as pl
from jax.experimental.pallas import tpu as pltpu


def _round_up(x, m):
    return ((x + m - 1) // m) * m


def _tpu_generation_info():
    """Best-effort (VMEM capacity, device-kind string) query; safe fallbacks."""
    try:
        kind = jax.devices()[0].device_kind.lower()
    except Exception:  # pragma: no cover - defensive
        kind = ""
    vmem_cap = None
    try:
        vmem_cap = int(getattr(pltpu.get_tpu_info(), "vmem_capacity_bytes", 0)) or None
    except Exception:  # pragma: no cover - defensive
        vmem_cap = None
    if vmem_cap is None:
        # v7x has 64 MiB per TensorCore; v5e/v6e have 128 MiB.
        vmem_cap = 64 * 1024 * 1024 if "7" in kind else 128 * 1024 * 1024
    return vmem_cap, kind


def _ce_label_smooth_kernel(logits_ref, labels_ref, partial_ref, *,
                            epsilon, num_classes, batch, tile_rows,
                            low_precision_math):
    # logits_ref: (TB, K)   labels_ref: (TB, 1) int32
    # partial_ref: (1, 8, 128) f32 -- per-tile un-normalized partial sum.
    i = pl.program_id(0)

    x = logits_ref[...]                                           # (TB, K)
    if not low_precision_math:
        x = x.astype(jnp.float32)                                 # f32 math path
    labels = labels_ref[...]                                      # (TB, 1) int32

    # Row max in the compute dtype (exact for max).
    m = jnp.max(x, axis=-1, keepdims=True)                        # (TB, 1)
    m32 = m.astype(jnp.float32)

    # `shifted` only feeds exp; exp-sum accumulated in f32.
    p = jnp.exp(x - m)                                            # (TB, K)
    sum_exp = jnp.sum(p.astype(jnp.float32), axis=-1, keepdims=True)
    lse = jnp.log(sum_exp)                                        # (TB, 1) f32

    # Row sum of raw logits (f32 accumulation); sum_shifted = sum(x) - K*m.
    sum_x = jnp.sum(x, axis=-1, keepdims=True, dtype=jnp.float32)

    # Picked logit at the label column via a (1, K) lane iota broadcast
    # against (TB, 1) labels -- no (TB, K) int32 temporary.
    class_ids = jax.lax.broadcasted_iota(jnp.int32, (1, x.shape[-1]), 1)
    picked_x = jnp.sum(jnp.where(class_ids == labels, x, 0),
                       axis=-1, keepdims=True, dtype=jnp.float32)  # (TB, 1)

    kf = jnp.float32(num_classes)
    picked_shifted = picked_x - m32
    sum_shifted = sum_x - kf * m32
    per_row = (-(1.0 - epsilon) * (picked_shifted - lse)
               - (epsilon / num_classes) * (sum_shifted - kf * lse))  # (TB, 1)

    # Mask rows past the true batch size (partial last tile). Use where (not
    # multiply) so garbage/NaN in padded rows never propagates.
    row_ids = i * tile_rows + jax.lax.broadcasted_iota(
        jnp.int32, per_row.shape, 0)
    per_row = jnp.where(row_ids < batch, per_row, 0.0)

    partial = jnp.sum(per_row)                                    # scalar f32
    partial_ref[...] = jnp.broadcast_to(
        partial, partial_ref.shape).astype(jnp.float32)


def cross_entropy_label_smooth(logits, labels, *, num_classes, epsilon=0.1,
                               tile_rows=None):
    """Pallas equivalent of CrossEntropyLabelSmooth.forward.

    Args:
      logits: (B, K) float array (pre-softmax predictions), f32 or bf16.
      labels: (B,)   int array of ground-truth class ids.
    Returns:
      scalar float32 loss.
    """
    b, k = logits.shape
    assert k == num_classes
    labels_2d = labels.reshape(b, 1).astype(jnp.int32)

    vmem_cap, kind = _tpu_generation_info()
    is_v7 = ("7" in kind) or (vmem_cap <= 64 * 1024 * 1024)
    has_bf16_vector_units = is_v7 or ("v6" in kind)
    low_precision_math = bool(logits.dtype == jnp.bfloat16
                              and has_bf16_vector_units)

    if is_v7:
        vmem_limit_bytes = 26 * 1024 * 1024     # 64 MiB VMEM/TC: leave headroom
        sizing_budget = 20 * 1024 * 1024
        tile_input_bytes_target = 3 * 1024 * 1024
    else:
        vmem_limit_bytes = 48 * 1024 * 1024     # 128 MiB VMEM on v5e/v6e
        sizing_budget = 36 * 1024 * 1024
        tile_input_bytes_target = 6 * 1024 * 1024

    itemsize = jnp.dtype(logits.dtype).itemsize
    if tile_rows is None:
        # Bytes per row = double-buffered input block + in-kernel temporaries
        # (exp tile, shifted/upcast copies, compare temps). Conservative.
        inter_per_row = (8 if low_precision_math else 12) * k
        bytes_per_row = 2 * k * itemsize + inter_per_row
        tb_vmem = sizing_budget // max(1, bytes_per_row)
        tb_target = tile_input_bytes_target // max(1, k * itemsize)
        tb = min(tb_vmem, tb_target)
        tb = max(8, (tb // 8) * 8)
        tb = min(tb, _round_up(b, 8))
        if is_v7 and b > 8:
            # Ensure >=2 tiles so the "parallel" axis feeds both TensorCores.
            tb = min(tb, _round_up((b + 1) // 2, 8))
        tile_rows = max(8, tb)
    assert tile_rows % 8 == 0
    num_tiles = pl.cdiv(b, tile_rows)

    kernel = functools.partial(
        _ce_label_smooth_kernel,
        epsilon=float(epsilon),
        num_classes=int(num_classes),
        batch=int(b),
        tile_rows=int(tile_rows),
        low_precision_math=low_precision_math,
    )

    partials = pl.pallas_call(
        kernel,
        out_shape=jax.ShapeDtypeStruct((num_tiles, 8, 128), jnp.float32),
        grid=(num_tiles,),
        in_specs=[
            pl.BlockSpec((tile_rows, k), lambda i: (i, 0)),
            pl.BlockSpec((tile_rows, 1), lambda i: (i, 0)),
        ],
        out_specs=pl.BlockSpec((1, 8, 128), lambda i: (i, 0, 0)),
        compiler_params=pltpu.CompilerParams(
            dimension_semantics=("parallel",),
            vmem_limit_bytes=vmem_limit_bytes,
        ),
    )(logits, labels_2d)

    # Tiny final reduction + single divide by the *global* batch size.
    return partials[:, 0, 0].sum() * jnp.float32(1.0 / b)


def _reference(logits, labels, num_classes, epsilon=0.1):
    log_probs = jax.nn.log_softmax(logits.astype(jnp.float32), axis=1)
    onehot = jax.nn.one_hot(labels, num_classes, dtype=jnp.float32)
    targets = (1.0 - epsilon) * onehot + epsilon / num_classes
    return (-targets * log_probs).mean(0).sum()


if __name__ == "__main__":
    epsilon = 0.1

    # --- Test 1: small shapes consistent with the module (batch=8, K=16). ---
    num_classes = 16
    batch = 8
    key = jax.random.PRNGKey(0)
    kk1, kk2 = jax.random.split(key)
    logits = jax.random.normal(kk1, (batch, num_classes), dtype=jnp.float32)
    labels = jax.random.randint(kk2, (batch,), 0, num_classes, dtype=jnp.int32)

    loss = cross_entropy_label_smooth(
        logits, labels, num_classes=num_classes, epsilon=epsilon)
    loss = jax.block_until_ready(loss)
    ref = _reference(logits, labels, num_classes, epsilon)
    assert jnp.allclose(loss, ref, atol=1e-4, rtol=1e-4), (loss, ref)

    # --- Test 2: ragged batch / multi-tile path exercises row masking. ------
    b2, c2 = 37, 200
    kk3, kk4 = jax.random.split(jax.random.PRNGKey(1))
    logits2 = jax.random.normal(kk3, (b2, c2), dtype=jnp.float32)
    labels2 = jax.random.randint(kk4, (b2,), 0, c2, dtype=jnp.int32)
    loss2 = cross_entropy_label_smooth(
        logits2, labels2, num_classes=c2, epsilon=epsilon, tile_rows=16)
    loss2 = jax.block_until_ready(loss2)
    ref2 = _reference(logits2, labels2, c2, epsilon)
    assert jnp.allclose(loss2, ref2, atol=1e-4, rtol=1e-4), (loss2, ref2)

    # --- Test 3: bf16 logits (bf16 hot math on v6e/v7x, f32 accumulators). --
    logits2_bf16 = logits2.astype(jnp.bfloat16)
    loss3 = cross_entropy_label_smooth(
        logits2_bf16, labels2, num_classes=c2, epsilon=epsilon)
    loss3 = jax.block_until_ready(loss3)
    ref3 = _reference(logits2_bf16.astype(jnp.float32), labels2, c2, epsilon)
    assert jnp.allclose(loss3, ref3, atol=2e-3, rtol=2e-3), (loss3, ref3)

    print("KERNEL_OK")
</pallas_src>

<mosaic_0001>
module attributes {stable_mosaic.version = 11 : i64} {
  func.func @_ce_label_smooth_kernel(%arg0: i32, %arg1: memref<8x16xf32, #tpu.memory_space<vmem>>, %arg2: memref<8x1xi32, #tpu.memory_space<vmem>>, %arg3: memref<1x8x128xf32, #tpu.memory_space<vmem>>) attributes {dimension_semantics = [#tpu.dimension_semantics<parallel>], iteration_bounds = array<i64: 1>, scalar_prefetch = 0 : i64, scratch_operands = 0 : i64, tpu.core_type = #tpu.core_type<tc>, window_params = [{transform_indices = @transform_0, window_bounds = array<i64: 8, 16>}, {transform_indices = @transform_1, window_bounds = array<i64: 8, 1>}, {transform_indices = @transform_2, window_bounds = array<i64: 1, 8, 128>}]} {
    %c0 = arith.constant 0 : index
    %c0_0 = arith.constant 0 : index
    %0 = vector.load %arg1[%c0, %c0_0] : memref<8x16xf32, #tpu.memory_space<vmem>>, vector<8x16xf32>
    %c0_1 = arith.constant 0 : index
    %c0_2 = arith.constant 0 : index
    %1 = vector.load %arg2[%c0_1, %c0_2] : memref<8x1xi32, #tpu.memory_space<vmem>>, vector<8x1xi32>
    %cst = arith.constant dense<0xFF800000> : vector<8xf32>
    %2 = vector.multi_reduction <maximumf>, %0, %cst [1] : vector<8x16xf32> to vector<8xf32>
    %3 = vector.shape_cast %2 : vector<8xf32> to vector<8x1xf32>
    %4 = vector.broadcast %3 : vector<8x1xf32> to vector<8x16xf32>
    %5 = arith.subf %0, %4 : vector<8x16xf32>
    %6 = math.exp %5 : vector<8x16xf32>
    %cst_3 = arith.constant dense<0.000000e+00> : vector<8xf32>
    %7 = vector.multi_reduction <add>, %6, %cst_3 [1] : vector<8x16xf32> to vector<8xf32>
    %8 = vector.shape_cast %7 : vector<8xf32> to vector<8x1xf32>
    %9 = math.log %8 : vector<8x1xf32>
    %cst_4 = arith.constant dense<0.000000e+00> : vector<8xf32>
    %10 = vector.multi_reduction <add>, %0, %cst_4 [1] : vector<8x16xf32> to vector<8xf32>
    %11 = vector.shape_cast %10 : vector<8xf32> to vector<8x1xf32>
    %12 = tpu.iota {dimensions = array<i32: 1>} : vector<1x16xi32>
    %13 = vector.broadcast %12 : vector<1x16xi32> to vector<8x16xi32>
    %14 = vector.broadcast %1 : vector<8x1xi32> to vector<8x16xi32>
    %15 = arith.cmpi eq, %13, %14 : vector<8x16xi32>
    %c0_i32 = arith.constant 0 : i32
    %16 = arith.sitofp %c0_i32 : i32 to f32
    %17 = vector.broadcast %16 : f32 to vector<8x16xf32>
    %18 = arith.select %15, %0, %17 : vector<8x16xi1>, vector<8x16xf32>
    %cst_5 = arith.constant dense<0.000000e+00> : vector<8xf32>
    %19 = vector.multi_reduction <add>, %18, %cst_5 [1] : vector<8x16xf32> to vector<8xf32>
    %20 = vector.shape_cast %19 : vector<8xf32> to vector<8x1xf32>
    %21 = arith.subf %20, %3 : vector<8x1xf32>
    %cst_6 = arith.constant 1.600000e+01 : f32
    %22 = vector.broadcast %cst_6 : f32 to vector<8x1xf32>
    %23 = arith.mulf %22, %3 : vector<8x1xf32>
    %24 = arith.subf %11, %23 : vector<8x1xf32>
    %25 = arith.subf %21, %9 : vector<8x1xf32>
    %cst_7 = arith.constant -0.899999976 : f32
    %26 = vector.broadcast %cst_7 : f32 to vector<8x1xf32>
    %27 = arith.mulf %26, %25 : vector<8x1xf32>
    %cst_8 = arith.constant 1.600000e+01 : f32
    %28 = vector.broadcast %cst_8 : f32 to vector<8x1xf32>
    %29 = arith.mulf %28, %9 : vector<8x1xf32>
    %30 = arith.subf %24, %29 : vector<8x1xf32>
    %cst_9 = arith.constant 6.250000e-03 : f32
    %31 = vector.broadcast %cst_9 : f32 to vector<8x1xf32>
    %32 = arith.mulf %31, %30 : vector<8x1xf32>
    %33 = arith.subf %27, %32 : vector<8x1xf32>
    %c8_i32 = arith.constant 8 : i32
    %34 = arith.muli %arg0, %c8_i32 : i32
    %35 = tpu.iota {dimensions = array<i32: 0>} : vector<8x1xi32>
    %36 = vector.broadcast %34 : i32 to vector<8x1xi32>
    %37 = arith.addi %36, %35 : vector<8x1xi32>
    %c8_i32_10 = arith.constant 8 : i32
    %38 = vector.broadcast %c8_i32_10 : i32 to vector<8x1xi32>
    %39 = arith.cmpi slt, %37, %38 : vector<8x1xi32>
    %cst_11 = arith.constant 0.000000e+00 : f32
    %40 = vector.broadcast %cst_11 : f32 to vector<8x1xf32>
    %41 = arith.select %39, %33, %40 : vector<8x1xi1>, vector<8x1xf32>
    %42 = vector.shape_cast %41 : vector<8x1xf32> to vector<1x8x1xf32>
    %cst_12 = arith.constant dense<0.000000e+00> : vector<1xf32>
    %43 = vector.multi_reduction <add>, %42, %cst_12 [1, 2] : vector<1x8x1xf32> to vector<1xf32>
    %44 = vector.shape_cast %43 : vector<1xf32> to vector<1x1x1xf32>
    %45 = vector.extract %44[0, 0, 0] : f32 from vector<1x1x1xf32>
    %46 = vector.broadcast %45 : f32 to vector<1x8x128xf32>
    %c0_13 = arith.constant 0 : index
    %c0_14 = arith.constant 0 : index
    %c0_15 = arith.constant 0 : index
    %47 = vector.load %arg3[%c0_13, %c0_14, %c0_15] : memref<1x8x128xf32, #tpu.memory_space<vmem>>, vector<1x8x128xf32>
    tpu.vector_store %arg3[%c0_13, %c0_14, %c0_15], %46 {strides = array<i32>} : memref<1x8x128xf32, #tpu.memory_space<vmem>>, vector<1x8x128xf32>,
    return
  }
  func.func @transform_0(%arg0: i32) -> (i32, i32) {
    %c0_i32 = arith.constant 0 : i32
    %c0_i32_0 = arith.constant 0 : i32
    return %arg0, %c0_i32 : i32, i32
  }
  func.func @transform_1(%arg0: i32) -> (i32, i32) {
    %c0_i32 = arith.constant 0 : i32
    %c0_i32_0 = arith.constant 0 : i32
    return %arg0, %c0_i32 : i32, i32
  }
  func.func @transform_2(%arg0: i32) -> (i32, i32, i32) {
    %c0_i32 = arith.constant 0 : i32
    %c0_i32_0 = arith.constant 0 : i32
    %c0_i32_1 = arith.constant 0 : i32
    return %arg0, %c0_i32, %c0_i32_0 : i32, i32, i32
  }
}

</mosaic_0001>

<llo_original>
// kernel: tpu_custom_call.1
$region0: #{tpu_custom_call.1}
  #allocation0 [shape = 'u32[]', space=smem, size = 0x4, offset = 0x4, fixed_abs, tag = 'smem constant byte address 0x4 - core index']
  #allocation1 [shape = 'u32[144,128]{1,0:T(1,128)}', space=vmem, size = 0x12000, scoped, tag = 'internal scratch']
  %s0 = inlined_call_operand.vmem [shape: f32[8,16], index: 0, kind: input, shape index: {}]
  %s1 = inlined_call_operand.vmem [shape: s32[8,1], index: 1, kind: input, shape index: {}]
  %s2 = inlined_call_operand.hbm [shape: f32[1,8,128], index: 2, kind: output, shape index: {}]
  %s3 = sld [smem:[#allocation0]]
  $region18: #{tpu_custom_call.1} parent=0
    _
  %s5 = ssub.s32 1, %s3
  %s6 = scalar_select 0, %s5, %s3
  $region1: #{tpu_custom_call.1} parent=0
    #allocation2 [shape = 'u8[4096]{0}', space=vmem, size = 0x1000, scoped, tag = 'output window, operand 0, single buffered']
    #allocation3 [shape = 's32[1]{0}', space=sflag, size = 0x4, scoped, tag = 'scoped memory for tpu_custom_call.1']
    %7 = vsyncpa [#allocation3], 0
    // Predicated region
    $region2: #{tpu_custom_call.1} parent=1 // pred_check
      _
    $region3: #{tpu_custom_call.1} parent=1 // pred_check_branch
      %9 = sbr.rel (0) target = $region5
    $region4: #{tpu_custom_call.1} parent=1 // pred_region
      _
    $region5: #{tpu_custom_call.1} parent=1 // pred_fallthru
      _
    // Predicated region
    $region6: #{tpu_custom_call.1} parent=1 // pred_check
      _
    $region7: #{tpu_custom_call.1} parent=1 // pred_check_branch
      %11 = sbr.rel (0) target = $region9
    $region8: #{tpu_custom_call.1} parent=1 // pred_region
      _
    $region9: #{tpu_custom_call.1} parent=1 // pred_fallthru
      _
    %v12 = vld [vmem:[%s0] sm:$0xff]
    %v13 = vld [vmem:[%s1] sm:$0xff]
    %vm14 = vcmask 130048
    %v15 = vsel %vm14, %v12, -inf
    %16 = vmax.xlane.f32.xlu0 %v15
    %v17 = vpop.xlane.xlu0 %16
    %v18 = vsub.f32 %v12, %v17
    %v19 = vmul.f32 %v18, 1.442695
    %v20 = vpow.pop %v19
    %v21 = vsel %vm14, %v20, 0.0
    %22 = vadd.xlane.f32.xlu0 %v21
    %v23 = vpop.xlane.xlu0 %22
    %v24 = vlog2.pop %v23
    %v25 = vmul.f32 %v24, 0.6931472
    %v26 = vsel %vm14, %v12, 0.0
    %27 = vadd.xlane.f32.xlu0 %v26
    %v28 = vpop.xlane.xlu0 %27
    %v29 = vlaneseq
    %v30 = vand.u32 %v29, 127
    %31 = vset.pattern.permute.xlu0 0
    %32 = vperm.xlu0 %31, %v13
    %v33 = vpop.permute.xlu0 %32
    %vm34 = vcmp.eq.s32.totalorder %v30, %v33
    %v35 = vsel %vm34, %v12, 0.0
    %v36 = vsel %vm14, %v35, 0.0
    %37 = vadd.xlane.f32.xlu0 %v36
    %v38 = vpop.xlane.xlu0 %37
    %v39 = vsub.f32 %v38, %v17
    %v40 = vmul.f32 %v17, 16.0
    %v41 = vsub.f32 %v28, %v40
    %v42 = vsub.f32 %v39, %v25
    %v43 = vmul.f32 %v42, -0.9
    %v44 = vmul.f32 %v25, 16.0
    %v45 = vsub.f32 %v41, %v44
    %v46 = vmul.f32 %v45, 0.00625
    %v47 = vsub.f32 %v43, %v46
    %s48 = smul.u32 0, 8
    %v49 = vlaneseq
    %v50 = vshrl.u32 %v49, 7
    %v51 = vstv %s48
    %v52 = vadd.s32 %v51, %v50
    %vm53 = vcmp.lt.s32.totalorder %v52, 8
    %v54 = vsel %vm53, %v47, 0.0
    %vm55 = vcmask 7168
    %v56 = vsel %vm55, %v54, 0.0
    %57 = vadd.xlane.f32.xlu0 %v56
    %v58 = vpop.xlane.xlu0 %57
    %v59 = vrot.slane %v58, 4
    %v60 = vadd.f32 %v58, %v59
    %v61 = vrot.slane %v60, 2
    %v62 = vadd.f32 %v60, %v61
    %v63 = vrot.slane %v62, 1
    %v64 = vadd.f32 %v62, %v63
    %s65 = vtos %v64
    %v66 = vstv %s65
    %67 = vst [vmem:[#allocation2] sm:$0xff] %v66
    // Predicated region
    $region10: #{tpu_custom_call.1} parent=1 // pred_check
      _
    $region11: #{tpu_custom_call.1} parent=1 // pred_check_branch
      %69 = sbr.rel (0) target = $region13
    $region12: #{tpu_custom_call.1} parent=1 // pred_region
      %s71 = ssub.s32 128, 128
      %72 = vsyncadd [#allocation3], %s71
      %s74 = sshll.u32 [#allocation2], 4
      %s75 = int_to_ptr.vmem [resolvable:$true] %s74
      %77 = dma.vmem_to_hbm [thread:$0]  %s75, 128, %s2, [#allocation3]
    $region13: #{tpu_custom_call.1} parent=1 // pred_fallthru
      _
    // Predicated region
    $region14: #{tpu_custom_call.1} parent=1 // pred_check
      _
    $region15: #{tpu_custom_call.1} parent=1 // pred_check_branch
      %79 = sbr.rel (0) target = $region17
    $region16: #{tpu_custom_call.1} parent=1 // pred_region
      %80 = dma.done [#allocation3], 128
    $region17: #{tpu_custom_call.1} parent=1 // pred_fallthru
      _
    %81 = vsyncpa [#allocation3], 1

</llo_original>
